<compile_context>
chip_gen: v6e
topology: v6e:2x2x1
jax: 0.10.0
libtpu: 0.0.40
codegen_flags: <defaults>
</compile_context>

<pallas_src>
import functools

import jax
import jax.numpy as jnp
from jax.experimental import pallas as pl
from jax.experimental.pallas import tpu as pltpu


# ---------------------------------------------------------------------------
# Kernels
# ---------------------------------------------------------------------------

def _stats_kernel(x_ref, c_ref, sum_ref, sumsq_ref):
    """Accumulate per-channel sum / sum-of-squares of (x - center) across tiles."""
    @pl.when(jnp.logical_and(pl.program_id(0) == 0, pl.program_id(1) == 0))
    def _init():
        sum_ref[...] = jnp.zeros_like(sum_ref)
        sumsq_ref[...] = jnp.zeros_like(sumsq_ref)

    xc = x_ref[...].astype(jnp.float32) - c_ref[...]      # (1, C, t_hw) - (1, C, 1)
    sum_ref[...] += jnp.sum(xc, axis=2)                   # (1, C)
    sumsq_ref[...] += jnp.sum(xc * xc, axis=2)            # (1, C)


def _make_norm_kernel(activation: str, slope: float):
    def _norm_kernel(x_ref, scale_ref, shift_ref, o_ref):
        x = x_ref[...].astype(jnp.float32)                # (1, C, t_hw)
        y = x * scale_ref[...] + shift_ref[...]           # folded per-channel affine
        if activation == "leaky_relu":
            y = jnp.where(y >= 0, y, slope * y)
        elif activation == "elu":
            y = jnp.where(y >= 0, y, jnp.exp(y) - 1.0)
        # activation == "none": identity
        o_ref[...] = y.astype(o_ref.dtype)
    return _norm_kernel


# ---------------------------------------------------------------------------
# Tiling helper
# ---------------------------------------------------------------------------

def _pick_hw_tile(C: int, HW: int, dsize: int) -> int:
    """Largest lane-aligned HW tile that divides HW and keeps double-buffered
    in+out tiles under ~8 MiB (fits the default scoped-VMEM limit on all gens)."""
    if HW % 128 != 0:
        return HW  # full-extent block is always a legal BlockSpec
    budget = 8 * 1024 * 1024
    cap = max(128, budget // (4 * max(dsize, 4) * max(C, 1)))
    best, t = 128, 128
    while t <= HW:
        if HW % t == 0 and t <= cap:
            best = t
        t += 128
    return best


# ---------------------------------------------------------------------------
# Forward pass
# ---------------------------------------------------------------------------

@functools.partial(
    jax.jit,
    static_argnames=("training", "momentum", "eps", "activation", "slope"),
)
def inplace_abn_forward(x, weight, bias, running_mean, running_var, *,
                        training=True, momentum=0.1, eps=1e-5,
                        activation="leaky_relu", slope=0.01):
    """Returns (y_nchw, new_running_mean, new_running_var)."""
    N, C, H, W = x.shape
    HW = H * W
    L = N * HW
    dsize = jnp.dtype(x.dtype).itemsize

    x3 = x.reshape(N, C, HW)                 # free reshape; no layout transpose
    t_hw = _pick_hw_tile(C, HW, dsize)
    n_hw = HW // t_hw

    if training:
        # ---------------- phase 1: per-channel statistics ----------------
        center = running_mean.astype(jnp.float32).reshape(1, C, 1)
        s1, s2 = pl.pallas_call(
            _stats_kernel,
            out_shape=(
                jax.ShapeDtypeStruct((1, C), jnp.float32),
                jax.ShapeDtypeStruct((1, C), jnp.float32),
            ),
            grid_spec=pltpu.PrefetchScalarGridSpec(
                num_scalar_prefetch=0,
                grid=(N, n_hw),
                in_specs=[
                    pl.BlockSpec((1, C, t_hw), lambda n, j: (n, 0, j)),
                    pl.BlockSpec((1, C, 1), lambda n, j: (0, 0, 0)),
                ],
                out_specs=[
                    pl.BlockSpec((1, C), lambda n, j: (0, 0)),
                    pl.BlockSpec((1, C), lambda n, j: (0, 0)),
                ],
            ),
            compiler_params=pltpu.CompilerParams(
                dimension_semantics=("arbitrary", "arbitrary")),
            cost_estimate=pl.CostEstimate(
                flops=3 * L * C, transcendentals=0,
                bytes_accessed=L * C * dsize),
        )(x3, center)

        # TODO(synk): for extreme |mean|/std ratios a Welford/Chan per-tile merge
        # would be even more robust than the shifted sum/sumsq used here.
        s1 = s1.reshape(C)
        s2 = s2.reshape(C)
        mean = running_mean.astype(jnp.float32) + s1 / L
        var = jnp.maximum(s2 / L - (s1 / L) ** 2, 0.0)        # biased variance

        unbiased = var * (L / max(L - 1, 1))
        new_rm = (1.0 - momentum) * running_mean + momentum * mean
        new_rv = (1.0 - momentum) * running_var + momentum * unbiased
    else:
        mean = running_mean.astype(jnp.float32)
        var = running_var.astype(jnp.float32)
        new_rm, new_rv = running_mean, running_var

    # ---------------- fold affine into per-channel scale / shift ----------------
    w = (weight.astype(jnp.float32) if weight is not None
         else jnp.ones((C,), jnp.float32))
    b = (bias.astype(jnp.float32) if bias is not None
         else jnp.zeros((C,), jnp.float32))
    scale_c = w * jax.lax.rsqrt(var + eps)
    shift_c = b - mean * scale_c
    scale = scale_c.reshape(1, C, 1)
    shift = shift_c.reshape(1, C, 1)

    # ---------------- phase 2: normalize + activation (in place) ----------------
    y3 = pl.pallas_call(
        _make_norm_kernel(activation, float(slope)),
        out_shape=jax.ShapeDtypeStruct((N, C, HW), x.dtype),
        grid_spec=pltpu.PrefetchScalarGridSpec(
            num_scalar_prefetch=0,
            grid=(N, n_hw),
            in_specs=[
                pl.BlockSpec((1, C, t_hw), lambda n, j: (n, 0, j)),
                pl.BlockSpec((1, C, 1), lambda n, j: (0, 0, 0)),
                pl.BlockSpec((1, C, 1), lambda n, j: (0, 0, 0)),
            ],
            out_specs=pl.BlockSpec((1, C, t_hw), lambda n, j: (n, 0, j)),
        ),
        compiler_params=pltpu.CompilerParams(
            dimension_semantics=("parallel", "parallel")),
        input_output_aliases={0: 0},
        cost_estimate=pl.CostEstimate(
            flops=4 * L * C, transcendentals=0,
            bytes_accessed=2 * L * C * dsize),
    )(x3, scale, shift)

    return y3.reshape(N, C, H, W), new_rm, new_rv


# ---------------------------------------------------------------------------
# Module-like wrapper (mirrors the PyTorch parameters / buffers)
# ---------------------------------------------------------------------------

class InPlaceABNJax:
    def __init__(self, num_features, eps=1e-5, momentum=0.1, affine=True,
                 activation="leaky_relu", slope=0.01):
        self.num_features = num_features
        self.eps = eps
        self.momentum = momentum
        self.affine = affine
        self.activation = activation
        self.slope = slope
        # reset_parameters(): weight=1, bias=0, running_mean=0, running_var=1
        self.weight = jnp.ones((num_features,), jnp.float32) if affine else None
        self.bias = jnp.zeros((num_features,), jnp.float32) if affine else None
        self.running_mean = jnp.zeros((num_features,), jnp.float32)
        self.running_var = jnp.ones((num_features,), jnp.float32)
        self.training = True

    def __call__(self, x):
        y, rm, rv = inplace_abn_forward(
            x, self.weight, self.bias, self.running_mean, self.running_var,
            training=self.training, momentum=float(self.momentum),
            eps=float(self.eps), activation=self.activation,
            slope=float(self.slope),
        )
        self.running_mean = rm
        self.running_var = rv
        return y


# TODO(synk): only the forward pass is implemented; the custom autograd backward of
# the original inplace_abn (recomputing x from y) has no kernel here.

if __name__ == "__main__":
    key = jax.random.PRNGKey(0)
    N, C, H, W = 2, 4, 16, 16
    x = jax.random.normal(key, (N, C, H, W), dtype=jnp.float32) * 2.0 + 0.5

    abn = InPlaceABNJax(num_features=C)
    # Non-trivial affine parameters (deterministic, in-script).
    abn.weight = jnp.arange(1, C + 1, dtype=jnp.float32) * 0.5
    abn.bias = jnp.linspace(-0.3, 0.3, C, dtype=jnp.float32)

    y = abn(x)
    jax.block_until_ready(y)

    # Pure-JAX reference of the training-mode forward semantics.
    mean = x.mean(axis=(0, 2, 3), keepdims=True)
    var = ((x - mean) ** 2).mean(axis=(0, 2, 3), keepdims=True)
    y_ref = (x - mean) * jax.lax.rsqrt(var + abn.eps)
    y_ref = y_ref * abn.weight.reshape(1, C, 1, 1) + abn.bias.reshape(1, C, 1, 1)
    y_ref = jnp.where(y_ref >= 0, y_ref, abn.slope * y_ref)

    assert jnp.allclose(y, y_ref, atol=1e-4, rtol=1e-4), "mismatch vs reference"

    # Running-stats update check (unbiased var in the buffer, momentum=0.1).
    L = N * H * W
    rm_ref = 0.9 * jnp.zeros((C,)) + 0.1 * mean.reshape(C)
    rv_ref = 0.9 * jnp.ones((C,)) + 0.1 * var.reshape(C) * (L / (L - 1))
    assert jnp.allclose(abn.running_mean, rm_ref, atol=1e-4, rtol=1e-4)
    assert jnp.allclose(abn.running_var, rv_ref, atol=1e-4, rtol=1e-4)

    print("KERNEL_OK")
</pallas_src>

<mosaic_0001>
module attributes {stable_mosaic.version = 11 : i64} {
  func.func @_stats_kernel(%arg0: i32, %arg1: i32, %arg2: memref<1x4x256xf32, #tpu.memory_space<vmem>>, %arg3: memref<1x4x1xf32, #tpu.memory_space<vmem>>, %arg4: memref<1x4xf32, #tpu.memory_space<vmem>>, %arg5: memref<1x4xf32, #tpu.memory_space<vmem>>) attributes {dimension_semantics = [#tpu.dimension_semantics<arbitrary>, #tpu.dimension_semantics<arbitrary>], iteration_bounds = array<i64: 2, 1>, scalar_prefetch = 0 : i64, scratch_operands = 0 : i64, tpu.core_type = #tpu.core_type<tc>, window_params = [{transform_indices = @transform_0, window_bounds = array<i64: 1, 4, 256>}, {pipeline_mode = #tpu.pipeline_mode<synchronous>, transform_indices = @transform_1, window_bounds = array<i64: 1, 4, 1>}, {pipeline_mode = #tpu.pipeline_mode<synchronous>, transform_indices = @transform_2, window_bounds = array<i64: 1, 4>}, {pipeline_mode = #tpu.pipeline_mode<synchronous>, transform_indices = @transform_3, window_bounds = array<i64: 1, 4>}]} {
    %c0_i32 = arith.constant 0 : i32
    %0 = arith.cmpi eq, %arg0, %c0_i32 : i32
    %c0_i32_0 = arith.constant 0 : i32
    %1 = arith.cmpi eq, %arg1, %c0_i32_0 : i32
    %2 = arith.andi %0, %1 : i1
    %3 = arith.extui %2 : i1 to i32
    %c0_i32_1 = arith.constant 0 : i32
    %4 = arith.cmpi ne, %3, %c0_i32_1 : i32
    scf.if %4 {
      %cst_16 = arith.constant 0.000000e+00 : f32
      %18 = vector.broadcast %cst_16 : f32 to vector<1x4xf32>
      %c0_17 = arith.constant 0 : index
      %c0_18 = arith.constant 0 : index
      %19 = vector.load %arg4[%c0_17, %c0_18] : memref<1x4xf32, #tpu.memory_space<vmem>>, vector<1x4xf32>
      tpu.vector_store %arg4[%c0_17, %c0_18], %18 {strides = array<i32>} : memref<1x4xf32, #tpu.memory_space<vmem>>, vector<1x4xf32>,
      %cst_19 = arith.constant 0.000000e+00 : f32
      %20 = vector.broadcast %cst_19 : f32 to vector<1x4xf32>
      %c0_20 = arith.constant 0 : index
      %c0_21 = arith.constant 0 : index
      %21 = vector.load %arg5[%c0_20, %c0_21] : memref<1x4xf32, #tpu.memory_space<vmem>>, vector<1x4xf32>
      tpu.vector_store %arg5[%c0_20, %c0_21], %20 {strides = array<i32>} : memref<1x4xf32, #tpu.memory_space<vmem>>, vector<1x4xf32>,
    } else {
    }
    %c0 = arith.constant 0 : index
    %c0_2 = arith.constant 0 : index
    %c0_3 = arith.constant 0 : index
    %5 = vector.load %arg2[%c0, %c0_2, %c0_3] : memref<1x4x256xf32, #tpu.memory_space<vmem>>, vector<1x4x256xf32>
    %c0_4 = arith.constant 0 : index
    %c0_5 = arith.constant 0 : index
    %c0_6 = arith.constant 0 : index
    %6 = vector.load %arg3[%c0_4, %c0_5, %c0_6] : memref<1x4x1xf32, #tpu.memory_space<vmem>>, vector<1x4x1xf32>
    %7 = vector.broadcast %6 : vector<1x4x1xf32> to vector<1x4x256xf32>
    %8 = arith.subf %5, %7 : vector<1x4x256xf32>
    %c0_7 = arith.constant 0 : index
    %c0_8 = arith.constant 0 : index
    %9 = vector.load %arg4[%c0_7, %c0_8] : memref<1x4xf32, #tpu.memory_space<vmem>>, vector<1x4xf32>
    %cst = arith.constant dense<0.000000e+00> : vector<1x4xf32>
    %10 = vector.multi_reduction <add>, %8, %cst [2] : vector<1x4x256xf32> to vector<1x4xf32>
    %11 = arith.addf %9, %10 : vector<1x4xf32>
    %c0_9 = arith.constant 0 : index
    %c0_10 = arith.constant 0 : index
    %12 = vector.load %arg4[%c0_9, %c0_10] : memref<1x4xf32, #tpu.memory_space<vmem>>, vector<1x4xf32>
    tpu.vector_store %arg4[%c0_9, %c0_10], %11 {strides = array<i32>} : memref<1x4xf32, #tpu.memory_space<vmem>>, vector<1x4xf32>,
    %c0_11 = arith.constant 0 : index
    %c0_12 = arith.constant 0 : index
    %13 = vector.load %arg5[%c0_11, %c0_12] : memref<1x4xf32, #tpu.memory_space<vmem>>, vector<1x4xf32>
    %14 = arith.mulf %8, %8 : vector<1x4x256xf32>
    %cst_13 = arith.constant dense<0.000000e+00> : vector<1x4xf32>
    %15 = vector.multi_reduction <add>, %14, %cst_13 [2] : vector<1x4x256xf32> to vector<1x4xf32>
    %16 = arith.addf %13, %15 : vector<1x4xf32>
    %c0_14 = arith.constant 0 : index
    %c0_15 = arith.constant 0 : index
    %17 = vector.load %arg5[%c0_14, %c0_15] : memref<1x4xf32, #tpu.memory_space<vmem>>, vector<1x4xf32>
    tpu.vector_store %arg5[%c0_14, %c0_15], %16 {strides = array<i32>} : memref<1x4xf32, #tpu.memory_space<vmem>>, vector<1x4xf32>,
    return
  }
  func.func @transform_0(%arg0: i32, %arg1: i32) -> (i32, i32, i32) {
    %c0_i32 = arith.constant 0 : i32
    %c0_i32_0 = arith.constant 0 : i32
    return %arg0, %c0_i32, %arg1 : i32, i32, i32
  }
  func.func @transform_1(%arg0: i32, %arg1: i32) -> (i32, i32, i32) {
    %c0_i32 = arith.constant 0 : i32
    %c0_i32_0 = arith.constant 0 : i32
    %c0_i32_1 = arith.constant 0 : i32
    %c0_i32_2 = arith.constant 0 : i32
    return %c0_i32, %c0_i32_0, %c0_i32_1 : i32, i32, i32
  }
  func.func @transform_2(%arg0: i32, %arg1: i32) -> (i32, i32) {
    %c0_i32 = arith.constant 0 : i32
    %c0_i32_0 = arith.constant 0 : i32
    %c0_i32_1 = arith.constant 0 : i32
    return %c0_i32, %c0_i32_0 : i32, i32
  }
  func.func @transform_3(%arg0: i32, %arg1: i32) -> (i32, i32) {
    %c0_i32 = arith.constant 0 : i32
    %c0_i32_0 = arith.constant 0 : i32
    %c0_i32_1 = arith.constant 0 : i32
    return %c0_i32, %c0_i32_0 : i32, i32
  }
}

module attributes {stable_mosaic.version = 11 : i64} {
  func.func @_norm_kernel(%arg0: i32, %arg1: i32, %arg2: memref<1x4x256xf32, #tpu.memory_space<vmem>>, %arg3: memref<1x4x1xf32, #tpu.memory_space<vmem>>, %arg4: memref<1x4x1xf32, #tpu.memory_space<vmem>>, %arg5: memref<1x4x256xf32, #tpu.memory_space<vmem>>) attributes {dimension_semantics = [#tpu.dimension_semantics<parallel>, #tpu.dimension_semantics<parallel>], iteration_bounds = array<i64: 2, 1>, scalar_prefetch = 0 : i64, scratch_operands = 0 : i64, tpu.core_type = #tpu.core_type<tc>, window_params = [{transform_indices = @transform_0, window_bounds = array<i64: 1, 4, 256>}, {pipeline_mode = #tpu.pipeline_mode<synchronous>, transform_indices = @transform_1, window_bounds = array<i64: 1, 4, 1>}, {pipeline_mode = #tpu.pipeline_mode<synchronous>, transform_indices = @transform_2, window_bounds = array<i64: 1, 4, 1>}, {transform_indices = @transform_3, window_bounds = array<i64: 1, 4, 256>}]} {
    %c0 = arith.constant 0 : index
    %c0_0 = arith.constant 0 : index
    %c0_1 = arith.constant 0 : index
    %0 = vector.load %arg2[%c0, %c0_0, %c0_1] : memref<1x4x256xf32, #tpu.memory_space<vmem>>, vector<1x4x256xf32>
    %c0_2 = arith.constant 0 : index
    %c0_3 = arith.constant 0 : index
    %c0_4 = arith.constant 0 : index
    %1 = vector.load %arg3[%c0_2, %c0_3, %c0_4] : memref<1x4x1xf32, #tpu.memory_space<vmem>>, vector<1x4x1xf32>
    %2 = vector.broadcast %1 : vector<1x4x1xf32> to vector<1x4x256xf32>
    %3 = arith.mulf %0, %2 : vector<1x4x256xf32>
    %c0_5 = arith.constant 0 : index
    %c0_6 = arith.constant 0 : index
    %c0_7 = arith.constant 0 : index
    %4 = vector.load %arg4[%c0_5, %c0_6, %c0_7] : memref<1x4x1xf32, #tpu.memory_space<vmem>>, vector<1x4x1xf32>
    %5 = vector.broadcast %4 : vector<1x4x1xf32> to vector<1x4x256xf32>
    %6 = arith.addf %3, %5 : vector<1x4x256xf32>
    %cst = arith.constant 0.000000e+00 : f32
    %7 = vector.broadcast %cst : f32 to vector<1x4x256xf32>
    %8 = arith.cmpf oge, %6, %7 : vector<1x4x256xf32>
    %cst_8 = arith.constant 0.00999999977 : f32
    %9 = vector.broadcast %cst_8 : f32 to vector<1x4x256xf32>
    %10 = arith.mulf %9, %6 : vector<1x4x256xf32>
    %11 = arith.select %8, %6, %10 : vector<1x4x256xi1>, vector<1x4x256xf32>
    %c0_9 = arith.constant 0 : index
    %c0_10 = arith.constant 0 : index
    %c0_11 = arith.constant 0 : index
    %12 = vector.load %arg5[%c0_9, %c0_10, %c0_11] : memref<1x4x256xf32, #tpu.memory_space<vmem>>, vector<1x4x256xf32>
    tpu.vector_store %arg5[%c0_9, %c0_10, %c0_11], %11 {strides = array<i32>} : memref<1x4x256xf32, #tpu.memory_space<vmem>>, vector<1x4x256xf32>,
    return
  }
  func.func @transform_0(%arg0: i32, %arg1: i32) -> (i32, i32, i32) {
    %c0_i32 = arith.constant 0 : i32
    %c0_i32_0 = arith.constant 0 : i32
    return %arg0, %c0_i32, %arg1 : i32, i32, i32
  }
  func.func @transform_1(%arg0: i32, %arg1: i32) -> (i32, i32, i32) {
    %c0_i32 = arith.constant 0 : i32
    %c0_i32_0 = arith.constant 0 : i32
    %c0_i32_1 = arith.constant 0 : i32
    %c0_i32_2 = arith.constant 0 : i32
    return %c0_i32, %c0_i32_0, %c0_i32_1 : i32, i32, i32
  }
  func.func @transform_2(%arg0: i32, %arg1: i32) -> (i32, i32, i32) {
    %c0_i32 = arith.constant 0 : i32
    %c0_i32_0 = arith.constant 0 : i32
    %c0_i32_1 = arith.constant 0 : i32
    %c0_i32_2 = arith.constant 0 : i32
    return %c0_i32, %c0_i32_0, %c0_i32_1 : i32, i32, i32
  }
  func.func @transform_3(%arg0: i32, %arg1: i32) -> (i32, i32, i32) {
    %c0_i32 = arith.constant 0 : i32
    %c0_i32_0 = arith.constant 0 : i32
    return %arg0, %c0_i32, %arg1 : i32, i32, i32
  }
}

</mosaic_0001>

<llo_original>
// kernel: inplace_abn_forward.3
$region0: #{inplace_abn_forward.3}
  #allocation0 [shape = 'u32[]', space=smem, size = 0x4, offset = 0x4, fixed_abs, tag = 'smem constant byte address 0x4 - core index']
  #allocation1 [shape = 'u32[144,128]{1,0:T(1,128)}', space=vmem, size = 0x12000, scoped, tag = 'internal scratch']
  %s0 = inlined_call_operand.vmem [shape: f32[2,4,256], index: 0, kind: input, shape index: {}, may-alias: {0,3}]
  %s1 = inlined_call_operand.vmem [shape: f32[1,4,1], index: 1, kind: input, shape index: {}]
  %s2 = inlined_call_operand.vmem [shape: f32[1,4,1], index: 2, kind: input, shape index: {}]
  %s3 = inlined_call_operand.vmem [shape: f32[2,4,256], index: 3, kind: output, shape index: {}, may-alias: {0,3}]
  %s4 = sld [smem:[#allocation0]]
  $region45: #{inplace_abn_forward.3} parent=0
    _
  %s6 = ssub.s32 1, %s4
  %s7 = scalar_select 0, %s6, %s4
  loop: start=0, step=1, limit=4
  $region2: #{inplace_abn_forward.3} parent=0 // loop_pre_header
    _
  $region3: #{inplace_abn_forward.3} parent=0 // loop_header
    %s9 = sphi 0, %s13
    %p10 = scmp.ge.s32.totalorder %s9, 4
    %s16 = sphi 0, %s28
    %s17 = sphi 0, %s24
    %s18 = sphi 0, %s16
    %s19 = sphi 0, %s17
    %s20 = sphi 0, %s18
    %s21 = sphi 0, %s19
    %s33 = sphi 0, %s35
    %s36 = sphi 0, %s33
    %s37 = sphi 0, %s36
    %s53 = sphi 0, %s37
    %s57 = sphi 0, %s57
    %s59 = sphi 0, %s57
    %s60 = sphi 0, %s59
    %s74 = sphi 0, %s60
    %s78 = sphi 0, %s78
    %s80 = sphi 0, %s78
    %s81 = sphi 0, %s80
    %s95 = sphi 0, %s81
    %s103 = sphi 0, %s105
    %s106 = sphi 0, %s103
    %s107 = sphi 0, %s106
    %s123 = sphi 0, %s107
  $region4: #{inplace_abn_forward.3} parent=0 // loop_header_branch
    %12 = sbr.rel (%p10) target = $region8
  $region5: #{inplace_abn_forward.3} parent=0 // loop_body
    %s14 = ssub.s32 %s9, 1
    %s15 = ssub.s32 %s9, 2
    %s22 = sadd.s32 1, %s17
    %p23 = scmp.ge.s32.totalorder %s22, 1
    %s24 = scalar_select %p23, 0, %s22
    %s25 = sadd.s32 1, %s16
    %s26 = scalar_select %p23, %s25, %s16
    %p27 = scmp.ge.s32.totalorder %s26, 2
    %s28 = scalar_select %p27, 0, %s26
    %s29 = ssub.s32 %s16, %s28
    %s30 = ssub.s32 %s17, %s24
    %s31 = sor.u32 %s29, %s30
    %p32 = scmp.eq.s32.totalorder %s31, 0
    %s34 = sadd.s32 %s33, 1
    %s35 = scalar_select %p32, %s33, %s34
    %p38 = pneg %p32
    %p39 = scmp.eq.s32.totalorder %s9, 1
    %p40 = por %p38, %p39
    %p41 = scmp.ne.s32.totalorder %s33, %s36
    %p42 = scmp.eq.s32.totalorder %s9, 0
    %p43 = por %p41, %p42
    %p44 = scmp.ne.s32.totalorder %s33, %s36
    %p45 = scmp.eq.s32.totalorder %s14, 1
    %p46 = por %p44, %p45
    %p47 = scmp.ne.s32.totalorder %s36, %s37
    %p48 = scmp.eq.s32.totalorder %s14, 0
    %p49 = por %p47, %p48
    %p50 = scmp.ne.s32.totalorder %s36, %s37
    %p51 = scmp.eq.s32.totalorder %s15, 1
    %p52 = por %p50, %p51
    %p54 = scmp.ne.s32.totalorder %s37, %s53
    %p55 = scmp.eq.s32.totalorder %s15, 0
    %p56 = por %p54, %p55
    %s58 = sadd.s32 %s57, 1
    %p61 = scmp.eq.s32.totalorder %s9, 1
    %p62 = scmp.ne.s32.totalorder %s57, %s59
    %p63 = scmp.eq.s32.totalorder %s9, 0
    %p64 = por %p62, %p63
    %p65 = scmp.ne.s32.totalorder %s57, %s59
    %p66 = scmp.eq.s32.totalorder %s14, 1
    %p67 = por %p65, %p66
    %p68 = scmp.ne.s32.totalorder %s59, %s60
    %p69 = scmp.eq.s32.totalorder %s14, 0
    %p70 = por %p68, %p69
    %p71 = scmp.ne.s32.totalorder %s59, %s60
    %p72 = scmp.eq.s32.totalorder %s15, 1
    %p73 = por %p71, %p72
    %p75 = scmp.ne.s32.totalorder %s60, %s74
    %p76 = scmp.eq.s32.totalorder %s15, 0
    %p77 = por %p75, %p76
    %s79 = sadd.s32 %s78, 1
    %p82 = scmp.eq.s32.totalorder %s9, 1
    %p83 = scmp.ne.s32.totalorder %s78, %s80
    %p84 = scmp.eq.s32.totalorder %s9, 0
    %p85 = por %p83, %p84
    %p86 = scmp.ne.s32.totalorder %s78, %s80
    %p87 = scmp.eq.s32.totalorder %s14, 1
    %p88 = por %p86, %p87
    %p89 = scmp.ne.s32.totalorder %s80, %s81
    %p90 = scmp.eq.s32.totalorder %s14, 0
    %p91 = por %p89, %p90
    %p92 = scmp.ne.s32.totalorder %s80, %s81
    %p93 = scmp.eq.s32.totalorder %s15, 1
    %p94 = por %p92, %p93
    %p96 = scmp.ne.s32.totalorder %s81, %s95
    %p97 = scmp.eq.s32.totalorder %s15, 0
    %p98 = por %p96, %p97
    %s99 = ssub.s32 %s16, %s28
    %s100 = ssub.s32 %s17, %s24
    %s101 = sor.u32 %s99, %s100
    %p102 = scmp.eq.s32.totalorder %s101, 0
    %s104 = sadd.s32 %s103, 1
    %s105 = scalar_select %p102, %s103, %s104
    %p108 = pneg %p102
    %p109 = scmp.eq.s32.totalorder %s9, 1
    %p110 = por %p108, %p109
    %p111 = scmp.ne.s32.totalorder %s103, %s106
    %p112 = scmp.eq.s32.totalorder %s9, 0
    %p113 = por %p111, %p112
    %p114 = scmp.ne.s32.totalorder %s103, %s106
    %p115 = scmp.eq.s32.totalorder %s14, 1
    %p116 = por %p114, %p115
    %p117 = scmp.ne.s32.totalorder %s106, %s107
    %p118 = scmp.eq.s32.totalorder %s14, 0
    %p119 = por %p117, %p118
    %p120 = scmp.ne.s32.totalorder %s106, %s107
    %p121 = scmp.eq.s32.totalorder %s15, 1
    %p122 = por %p120, %p121
    %p124 = scmp.ne.s32.totalorder %s107, %s123
    %p125 = scmp.eq.s32.totalorder %s15, 0
    %p126 = por %p124, %p125
    %p127 = scmp.le.s32.totalorder 1, %s9
    %p128 = scmp.lt.s32.totalorder %s9, 3
    %p129 = pnand %p127, %p128
    %p130 = pneg %p129
    // Predicated region
    $region9: #{inplace_abn_forward.3} parent=5 // pred_check
      _
    $region10: #{inplace_abn_forward.3} parent=5 // pred_check_branch
      %132 = sbr.rel (%p129) target = $region12
    $region11: #{inplace_abn_forward.3} parent=5 // pred_region
      %s133 = ssub.s32 %s9, 1
      // Predicated region
      $region13: #{inplace_abn_forward.3} parent=11 // pred_check
        %p134 = pneg %p70
      $region14: #{inplace_abn_forward.3} parent=11 // pred_check_branch
        %136 = sbr.rel (%p134) target = $region16
      $region15: #{inplace_abn_forward.3} parent=11 // pred_region
        _
      $region16: #{inplace_abn_forward.3} parent=11 // pred_fallthru
        _
      // Predicated region
      $region17: #{inplace_abn_forward.3} parent=11 // pred_check
        %p137 = pneg %p91
      $region18: #{inplace_abn_forward.3} parent=11 // pred_check_branch
        %139 = sbr.rel (%p137) target = $region20
      $region19: #{inplace_abn_forward.3} parent=11 // pred_region
        _
      $region20: #{inplace_abn_forward.3} parent=11 // pred_fallthru
        _
    $region12: #{inplace_abn_forward.3} parent=5 // pred_fallthru
      _
    %p140 = scmp.lt.s32.totalorder %s9, 2
    // Predicated region
    $region21: #{inplace_abn_forward.3} parent=5 // pred_check
      %p141 = pneg %p140
    $region22: #{inplace_abn_forward.3} parent=5 // pred_check_branch
      %143 = sbr.rel (%p141) target = $region24
    $region23: #{inplace_abn_forward.3} parent=5 // pred_region
      // Predicated region
      $region25: #{inplace_abn_forward.3} parent=23 // pred_check
        %p144 = pneg %p43
      $region26: #{inplace_abn_forward.3} parent=23 // pred_check_branch
        %146 = sbr.rel (%p144) target = $region28
      $region27: #{inplace_abn_forward.3} parent=23 // pred_region
        %s147 = smul.u32 2, %s17
        %p148 = scmp.lt.s32.totalorder %s16, 1
        %s149 = scalar_select %p148, %s16, 1
        %p150 = scmp.lt.s32.totalorder %s147, 1
        %s151 = scalar_select %p150, %s147, 1
        %s152 = smul.addr %s149, 2
        %s153 = sadd.s32 %s151, %s152
        %s154 = smul.addr %s153, 4
        %s155 = scalar_lea.vmem %s0, %s154
        %s156 = smul.u32 2, %s17
      $region28: #{inplace_abn_forward.3} parent=23 // pred_fallthru
        _
    $region24: #{inplace_abn_forward.3} parent=5 // pred_fallthru
      _
    %p157 = scmp.le.s32.totalorder 1, %s9
    %p158 = scmp.lt.s32.totalorder %s9, 3
    %p159 = pnand %p157, %p158
    %p160 = pneg %p159
    // Predicated region
    $region29: #{inplace_abn_forward.3} parent=5 // pred_check
      _
    $region30: #{inplace_abn_forward.3} parent=5 // pred_check_branch
      %162 = sbr.rel (%p159) target = $region32
    $region31: #{inplace_abn_forward.3} parent=5 // pred_region
      %s163 = ssub.s32 %s9, 1
      %s164 = smul.u32 2, %s19
      %p165 = scmp.lt.s32.totalorder %s18, 1
      %s166 = scalar_select %p165, %s18, 1
      %p167 = scmp.lt.s32.totalorder %s164, 1
      %s168 = scalar_select %p167, %s164, 1
      %s169 = smul.addr %s166, 2
      %s170 = sadd.s32 %s168, %s169
      %s171 = smul.addr %s170, 4
      %s172 = scalar_lea.vmem %s0, %s171
      %p173 = pneg %p49
      %p174 = pneg %p46
      %p175 = pneg %p70
      %p176 = pneg %p67
      %p177 = pneg %p91
      %p178 = pneg %p88
      %p179 = pneg %p119
      %p180 = pneg %p116
      %s181 = smul.u32 2, %s19
      %p182 = scmp.lt.s32.totalorder %s18, 1
      %s183 = scalar_select %p182, %s18, 1
      %p184 = scmp.lt.s32.totalorder %s181, 1
      %s185 = scalar_select %p184, %s181, 1
      %s186 = smul.addr %s183, 2
      %s187 = sadd.s32 %s185, %s186
      %s188 = smul.addr %s187, 4
      %s189 = scalar_lea.vmem %s3, %s188
      %s190 = smul.u32 2, %s19
      %p191 = scmp.lt.s32.totalorder %s18, 1
      %s192 = scalar_select %p191, %s18, 1
      %p193 = scmp.lt.s32.totalorder %s190, 1
      %s194 = scalar_select %p193, %s190, 1
      %s195 = smul.addr %s192, 2
      %s196 = sadd.s32 %s194, %s195
      %s197 = smul.addr %s196, 4
      %s198 = scalar_lea.vmem %s0, %s197
      %s199 = smul.u32 2, %s19
      %s200 = smul.u32 2, %s19
      %p201 = scmp.lt.s32.totalorder %s18, 1
      %s202 = scalar_select %p201, %s18, 1
      %p203 = scmp.lt.s32.totalorder %s200, 1
      %s204 = scalar_select %p203, %s200, 1
      %s205 = smul.addr %s202, 2
      %s206 = sadd.s32 %s204, %s205
      %s207 = smul.addr %s206, 4
      %s208 = scalar_lea.vmem %s3, %s207
      %s209 = smul.u32 2, %s19
      %v210 = vld [vmem:[%s198] sm:$0xff]
      %v211 = vld [vmem:[%s1] sm:$0xf]
      %213 = vset.pattern.permute.xlu0 0
      %214 = vperm.xlu0 %213, %v211
      %v215 = vpop.permute.xlu0 %214
      %v217 = vunpack.c.l.s4 839922192
      %v218 = vunpack.c.0.s8 %v217
      %v219 = vlaneseq
      %v220 = vshrl.u32 %v219, 7
      %v221 = vsub.s32 %v218, %v220
      %v222 = vrot.slane %v215, %v221
      %v224 = vmul.f32 %v210, %v222
      %v225 = vld [vmem:[%s2] sm:$0xf]
      %227 = vset.pattern.permute.xlu0 0
      %228 = vperm.xlu0 %227, %v225
      %v229 = vpop.permute.xlu0 %228
      %v231 = vunpack.c.l.s4 839922192
      %v232 = vunpack.c.0.s8 %v231
      %v233 = vlaneseq
      %v234 = vshrl.u32 %v233, 7
      %v235 = vsub.s32 %v232, %v234
      %v236 = vrot.slane %v229, %v235
      %v238 = vadd.f32 %v224, %v236
      %vm239 = vcmp.ge.f32.partialorder %v238, 0.0
      %v240 = vmul.f32 %v238, 0.01
      %v241 = vsel %vm239, %v238, %v240
      %242 = vst [vmem:[%s208] sm:$0xff] %v241
      %s243 = smul.u32 2, %s19
      %p244 = scmp.lt.s32.totalorder %s18, 1
      %s245 = scalar_select %p244, %s18, 1
      %p246 = scmp.lt.s32.totalorder %s243, 1
      %s247 = scalar_select %p246, %s243, 1
      %s248 = smul.addr %s245, 2
      %s249 = sadd.s32 %s247, %s248
      %s250 = smul.addr %s249, 4
      %s251 = scalar_lea.vmem %s3, %s250
      // Predicated region
      $region33: #{inplace_abn_forward.3} parent=31 // pred_check
        %p252 = pneg %p116
      $region34: #{inplace_abn_forward.3} parent=31 // pred_check_branch
        %254 = sbr.rel (%p252) target = $region36
      $region35: #{inplace_abn_forward.3} parent=31 // pred_region
        %s255 = smul.u32 2, %s19
      $region36: #{inplace_abn_forward.3} parent=31 // pred_fallthru
        _
    $region32: #{inplace_abn_forward.3} parent=5 // pred_fallthru
      _
    %p256 = scmp.le.s32.totalorder 2, %s9
    // Predicated region
    $region37: #{inplace_abn_forward.3} parent=5 // pred_check
      %p257 = pneg %p256
    $region38: #{inplace_abn_forward.3} parent=5 // pred_check_branch
      %259 = sbr.rel (%p257) target = $region40
    $region39: #{inplace_abn_forward.3} parent=5 // pred_region
      %s260 = ssub.s32 %s9, 2
      // Predicated region
      $region41: #{inplace_abn_forward.3} parent=39 // pred_check
        %p261 = pneg %p122
      $region42: #{inplace_abn_forward.3} parent=39 // pred_check_branch
        %263 = sbr.rel (%p261) target = $region44
      $region43: #{inplace_abn_forward.3} parent=39 // pred_region
        %s264 = smul.u32 2, %s21
        %p265 = scmp.lt.s32.totalorder %s20, 1
        %s266 = scalar_select %p265, %s20, 1
        %p267 = scmp.lt.s32.totalorder %s264, 1
        %s268 = scalar_select %p267, %s264, 1
        %s269 = smul.addr %s266, 2
        %s270 = sadd.s32 %s268, %s269
        %s271 = smul.addr %s270, 4
        %s272 = scalar_lea.vmem %s3, %s271
      $region44: #{inplace_abn_forward.3} parent=39 // pred_fallthru
        _
    $region40: #{inplace_abn_forward.3} parent=5 // pred_fallthru
      _
  $region6: #{inplace_abn_forward.3} parent=0 // loop_footer
    %s13 = sadd.s32 1, %s9
  $region7: #{inplace_abn_forward.3} parent=0 // loop_footer_branch
    %8 = sbr.rel target = $region3
  $region8: #{inplace_abn_forward.3} parent=0 // loop_exit
    _

// kernel: inplace_abn_forward.2
$region0: #{inplace_abn_forward.2}
  #allocation0 [shape = 'u32[]', space=smem, size = 0x4, offset = 0x4, fixed_abs, tag = 'smem constant byte address 0x4 - core index']
  #allocation1 [shape = 'u32[144,128]{1,0:T(1,128)}', space=vmem, size = 0x12000, scoped, tag = 'internal scratch']
  %s0 = inlined_call_operand.vmem [shape: f32[2,4,256], index: 0, kind: input, shape index: {}]
  %s1 = inlined_call_operand.vmem [shape: f32[1,4,1], index: 1, kind: input, shape index: {}]
  %s2 = inlined_call_operand.vmem [shape: f32[1,4], index: 2, kind: output, shape index: {0}]
  %s3 = inlined_call_operand.vmem [shape: f32[1,4], index: 3, kind: output, shape index: {1}]
  %4 = xla_tuple %s2, %s3
  %s5 = sld [smem:[#allocation0]]
  $region53: #{inplace_abn_forward.2} parent=0
    _
  %s7 = ssub.s32 1, %s5
  %s8 = scalar_select 0, %s7, %s5
  loop: start=0, step=1, limit=4
  $region2: #{inplace_abn_forward.2} parent=0 // loop_pre_header
    _
  $region3: #{inplace_abn_forward.2} parent=0 // loop_header
    %s10 = sphi 0, %s14
    %p11 = scmp.ge.s32.totalorder %s10, 4
    %s17 = sphi 0, %s29
    %s18 = sphi 0, %s25
    %s19 = sphi 0, %s17
    %s20 = sphi 0, %s18
    %s21 = sphi 0, %s19
    %s22 = sphi 0, %s20
    %s34 = sphi 0, %s36
    %s37 = sphi 0, %s34
    %s38 = sphi 0, %s37
    %s54 = sphi 0, %s38
    %s58 = sphi 0, %s58
    %s60 = sphi 0, %s58
    %s61 = sphi 0, %s60
    %s75 = sphi 0, %s61
    %s79 = sphi 0, %s79
    %s81 = sphi 0, %s79
    %s82 = sphi 0, %s81
    %s96 = sphi 0, %s82
    %s100 = sphi 0, %s100
    %s102 = sphi 0, %s100
    %s103 = sphi 0, %s102
    %s117 = sphi 0, %s103
  $region4: #{inplace_abn_forward.2} parent=0 // loop_header_branch
    %13 = sbr.rel (%p11) target = $region8
  $region5: #{inplace_abn_forward.2} parent=0 // loop_body
    %s15 = ssub.s32 %s10, 1
    %s16 = ssub.s32 %s10, 2
    %s23 = sadd.s32 1, %s18
    %p24 = scmp.ge.s32.totalorder %s23, 1
    %s25 = scalar_select %p24, 0, %s23
    %s26 = sadd.s32 1, %s17
    %s27 = scalar_select %p24, %s26, %s17
    %p28 = scmp.ge.s32.totalorder %s27, 2
    %s29 = scalar_select %p28, 0, %s27
    %s30 = ssub.s32 %s17, %s29
    %s31 = ssub.s32 %s18, %s25
    %s32 = sor.u32 %s30, %s31
    %p33 = scmp.eq.s32.totalorder %s32, 0
    %s35 = sadd.s32 %s34, 1
    %s36 = scalar_select %p33, %s34, %s35
    %p39 = pneg %p33
    %p40 = scmp.eq.s32.totalorder %s10, 1
    %p41 = por %p39, %p40
    %p42 = scmp.ne.s32.totalorder %s34, %s37
    %p43 = scmp.eq.s32.totalorder %s10, 0
    %p44 = por %p42, %p43
    %p45 = scmp.ne.s32.totalorder %s34, %s37
    %p46 = scmp.eq.s32.totalorder %s15, 1
    %p47 = por %p45, %p46
    %p48 = scmp.ne.s32.totalorder %s37, %s38
    %p49 = scmp.eq.s32.totalorder %s15, 0
    %p50 = por %p48, %p49
    %p51 = scmp.ne.s32.totalorder %s37, %s38
    %p52 = scmp.eq.s32.totalorder %s16, 1
    %p53 = por %p51, %p52
    %p55 = scmp.ne.s32.totalorder %s38, %s54
    %p56 = scmp.eq.s32.totalorder %s16, 0
    %p57 = por %p55, %p56
    %s59 = sadd.s32 %s58, 1
    %p62 = scmp.eq.s32.totalorder %s10, 1
    %p63 = scmp.ne.s32.totalorder %s58, %s60
    %p64 = scmp.eq.s32.totalorder %s10, 0
    %p65 = por %p63, %p64
    %p66 = scmp.ne.s32.totalorder %s58, %s60
    %p67 = scmp.eq.s32.totalorder %s15, 1
    %p68 = por %p66, %p67
    %p69 = scmp.ne.s32.totalorder %s60, %s61
    %p70 = scmp.eq.s32.totalorder %s15, 0
    %p71 = por %p69, %p70
    %p72 = scmp.ne.s32.totalorder %s60, %s61
    %p73 = scmp.eq.s32.totalorder %s16, 1
    %p74 = por %p72, %p73
    %p76 = scmp.ne.s32.totalorder %s61, %s75
    %p77 = scmp.eq.s32.totalorder %s16, 0
    %p78 = por %p76, %p77
    %s80 = sadd.s32 %s79, 1
    %p83 = scmp.eq.s32.totalorder %s10, 1
    %p84 = scmp.ne.s32.totalorder %s79, %s81
    %p85 = scmp.eq.s32.totalorder %s10, 0
    %p86 = por %p84, %p85
    %p87 = scmp.ne.s32.totalorder %s79, %s81
    %p88 = scmp.eq.s32.totalorder %s15, 1
    %p89 = por %p87, %p88
    %p90 = scmp.ne.s32.totalorder %s81, %s82
    %p91 = scmp.eq.s32.totalorder %s15, 0
    %p92 = por %p90, %p91
    %p93 = scmp.ne.s32.totalorder %s81, %s82
    %p94 = scmp.eq.s32.totalorder %s16, 1
    %p95 = por %p93, %p94
    %p97 = scmp.ne.s32.totalorder %s82, %s96
    %p98 = scmp.eq.s32.totalorder %s16, 0
    %p99 = por %p97, %p98
    %s101 = sadd.s32 %s100, 1
    %p104 = scmp.eq.s32.totalorder %s10, 1
    %p105 = scmp.ne.s32.totalorder %s100, %s102
    %p106 = scmp.eq.s32.totalorder %s10, 0
    %p107 = por %p105, %p106
    %p108 = scmp.ne.s32.totalorder %s100, %s102
    %p109 = scmp.eq.s32.totalorder %s15, 1
    %p110 = por %p108, %p109
    %p111 = scmp.ne.s32.totalorder %s102, %s103
    %p112 = scmp.eq.s32.totalorder %s15, 0
    %p113 = por %p111, %p112
    %p114 = scmp.ne.s32.totalorder %s102, %s103
    %p115 = scmp.eq.s32.totalorder %s16, 1
    %p116 = por %p114, %p115
    %p118 = scmp.ne.s32.totalorder %s103, %s117
    %p119 = scmp.eq.s32.totalorder %s16, 0
    %p120 = por %p118, %p119
    %p121 = scmp.le.s32.totalorder 1, %s10
    %p122 = scmp.lt.s32.totalorder %s10, 3
    %p123 = pnand %p121, %p122
    %p124 = pneg %p123
    // Predicated region
    $region9: #{inplace_abn_forward.2} parent=5 // pred_check
      _
    $region10: #{inplace_abn_forward.2} parent=5 // pred_check_branch
      %126 = sbr.rel (%p123) target = $region12
    $region11: #{inplace_abn_forward.2} parent=5 // pred_region
      %s127 = ssub.s32 %s10, 1
      // Predicated region
      $region13: #{inplace_abn_forward.2} parent=11 // pred_check
        %p128 = pneg %p71
      $region14: #{inplace_abn_forward.2} parent=11 // pred_check_branch
        %130 = sbr.rel (%p128) target = $region16
      $region15: #{inplace_abn_forward.2} parent=11 // pred_region
        _
      $region16: #{inplace_abn_forward.2} parent=11 // pred_fallthru
        _
    $region12: #{inplace_abn_forward.2} parent=5 // pred_fallthru
      _
    %p131 = scmp.lt.s32.totalorder %s10, 2
    // Predicated region
    $region17: #{inplace_abn_forward.2} parent=5 // pred_check
      %p132 = pneg %p131
    $region18: #{inplace_abn_forward.2} parent=5 // pred_check_branch
      %134 = sbr.rel (%p132) target = $region20
    $region19: #{inplace_abn_forward.2} parent=5 // pred_region
      // Predicated region
      $region21: #{inplace_abn_forward.2} parent=19 // pred_check
        %p135 = pneg %p44
      $region22: #{inplace_abn_forward.2} parent=19 // pred_check_branch
        %137 = sbr.rel (%p135) target = $region24
      $region23: #{inplace_abn_forward.2} parent=19 // pred_region
        %s138 = smul.u32 2, %s18
        %p139 = scmp.lt.s32.totalorder %s17, 1
        %s140 = scalar_select %p139, %s17, 1
        %p141 = scmp.lt.s32.totalorder %s138, 1
        %s142 = scalar_select %p141, %s138, 1
        %s143 = smul.addr %s140, 2
        %s144 = sadd.s32 %s142, %s143
        %s145 = smul.addr %s144, 4
        %s146 = scalar_lea.vmem %s0, %s145
        %s147 = smul.u32 2, %s18
      $region24: #{inplace_abn_forward.2} parent=19 // pred_fallthru
        _
    $region20: #{inplace_abn_forward.2} parent=5 // pred_fallthru
      _
    %p148 = scmp.le.s32.totalorder 1, %s10
    %p149 = scmp.lt.s32.totalorder %s10, 3
    %p150 = pnand %p148, %p149
    %p151 = pneg %p150
    // Predicated region
    $region25: #{inplace_abn_forward.2} parent=5 // pred_check
      _
    $region26: #{inplace_abn_forward.2} parent=5 // pred_check_branch
      %153 = sbr.rel (%p150) target = $region28
    $region27: #{inplace_abn_forward.2} parent=5 // pred_region
      %s154 = ssub.s32 %s10, 1
      %s155 = smul.u32 2, %s20
      %p156 = scmp.lt.s32.totalorder %s19, 1
      %s157 = scalar_select %p156, %s19, 1
      %p158 = scmp.lt.s32.totalorder %s155, 1
      %s159 = scalar_select %p158, %s155, 1
      %s160 = smul.addr %s157, 2
      %s161 = sadd.s32 %s159, %s160
      %s162 = smul.addr %s161, 4
      %s163 = scalar_lea.vmem %s0, %s162
      %p164 = pneg %p50
      %p165 = pneg %p47
      %p166 = pneg %p71
      %p167 = pneg %p68
      %p168 = pneg %p92
      %p169 = pneg %p89
      %p170 = pneg %p113
      %p171 = pneg %p110
      %s172 = smul.u32 2, %s20
      %p173 = scmp.lt.s32.totalorder %s19, 1
      %s174 = scalar_select %p173, %s19, 1
      %p175 = scmp.lt.s32.totalorder %s172, 1
      %s176 = scalar_select %p175, %s172, 1
      %s177 = smul.addr %s174, 2
      %s178 = sadd.s32 %s176, %s177
      %s179 = smul.addr %s178, 4
      %s180 = scalar_lea.vmem %s0, %s179
      %s181 = smul.u32 2, %s20
      %p182 = scmp.eq.s32.totalorder %s19, 0
      %p183 = scmp.eq.s32.totalorder %s20, 0
      %p184 = pnand %p182, %p183
      %p185 = pneg %p184
      // Predicated region
      $region29: #{inplace_abn_forward.2} parent=27 // pred_check
        _
      $region30: #{inplace_abn_forward.2} parent=27 // pred_check_branch
        %187 = sbr.rel (%p184) target = $region32
      $region31: #{inplace_abn_forward.2} parent=27 // pred_region
        %vm188 = vcmask 24576
        %189 = vst.msk [vmem:[%s2] sm:$0x1] %vm188, 0.0
        %190 = vst.msk [vmem:[%s3] sm:$0x1] %vm188, 0.0
      $region32: #{inplace_abn_forward.2} parent=27 // pred_fallthru
        _
      %v191 = vld [vmem:[%s180] sm:$0xff]
      %v192 = vld [vmem:[%s1] sm:$0xf]
      %194 = vset.pattern.permute.xlu0 0
      %195 = vperm.xlu0 %194, %v192
      %v196 = vpop.permute.xlu0 %195
      %v198 = vunpack.c.l.s4 839922192
      %v199 = vunpack.c.0.s8 %v198
      %v200 = vlaneseq
      %v201 = vshrl.u32 %v200, 7
      %v202 = vsub.s32 %v199, %v201
      %v203 = vrot.slane %v196, %v202
      %v205 = vsub.f32 %v191, %v203
      %v206 = vld [vmem:[%s2] sm:$0x1]
      %v208 = vcombine.high %v205, %v205
      %vm210 = vcmask 1043456
      %v211 = vsel %vm210, %v205, 0.0
      %v212 = vsel %vm210, %v208, 0.0
      %v213 = vadd.f32 %v211, %v212
      %214 = vadd.xlane.f32.xlu0 %v213
      %v215 = vpop.xlane.xlu0 %214
      %v217 = vlaneseq
      %v218 = vshrl.u32 %v217, 7
      %v219 = vsub.s32 0, %v218
      %v220 = vrot.slane %v215, %v219
      %v221 = vlaneseq
      %v222 = vshrl.u32 %v221, 7
      %v223 = vsub.s32 1, %v222
      %v224 = vrot.slane %v215, %v223
      %v225 = vlaneseq
      %v226 = vshrl.u32 %v225, 7
      %v227 = vsub.s32 2, %v226
      %v228 = vrot.slane %v215, %v227
      %v229 = vlaneseq
      %v230 = vshrl.u32 %v229, 7
      %v231 = vsub.s32 3, %v230
      %v232 = vrot.slane %v215, %v231
      %v233 = vcombine.low %v220, %v224
      %v234 = vcombine.low %v228, %v232
      %v236 = vunpack.c.l.s4 1966171168
      %v237 = vunpack.c.0.s8 %v236
      %v238 = vlaneseq
      %v239 = vshrl.u32 %v238, 7
      %v240 = vsub.s32 %v237, %v239
      %v241 = vrot.slane %v233, %v240
      %v243 = vunpack.c.l.s4 1966171168
      %v244 = vunpack.c.0.s8 %v243
      %v245 = vlaneseq
      %v246 = vshrl.u32 %v245, 7
      %v247 = vsub.s32 %v244, %v246
      %v248 = vrot.slane %v234, %v247
      %v249 = vcombine.low %v241, %v248
      %v251 = vunpack.c.l.s4 1966171168
      %v252 = vunpack.c.0.s8 %v251
      %v253 = vlaneseq
      %v254 = vshrl.u32 %v253, 7
      %v255 = vsub.s32 %v252, %v254
      %v256 = vrot.slane %v249, %v255
      %257 = vset.pattern.permute.xlu0 0
      %258 = vperm.xlu0 %257, %v256
      %v259 = vpop.permute.xlu0 %258
      %v260 = vlaneseq
      %v261 = vand.u32 %v260, 127
      %v262 = vlaneseq
      %v263 = vshrl.u32 %v262, 7
      %v264 = vsub.s32 %v261, %v263
      %v265 = vrot.slane %v259, %v264
      %v267 = vunpack.c.l.s4 1966171168
      %v268 = vunpack.c.0.s8 %v267
      %v269 = vlaneseq
      %v270 = vshrl.u32 %v269, 7
      %v271 = vsub.s32 %v268, %v270
      %v272 = vrot.slane %v265, %v271
      %v274 = vunpack.c.l.s4 1966171168
      %v275 = vunpack.c.0.s8 %v274
      %v276 = vlaneseq
      %v277 = vshrl.u32 %v276, 7
      %v278 = vsub.s32 %v275, %v277
      %v279 = vrot.slane %v272, %v278
      %v281 = vadd.f32 %v206, %v279
      %vm282 = vcmask 24576
      %283 = vst.msk [vmem:[%s2] sm:$0x1] %vm282, %v281
      %v284 = vld [vmem:[%s3] sm:$0x1]
      %v285 = vmul.f32 %v205, %v205
      %v287 = vcombine.high %v285, %v285
      %v289 = vsel %vm210, %v285, 0.0
      %v290 = vsel %vm210, %v287, 0.0
      %v291 = vadd.f32 %v289, %v290
      %292 = vadd.xlane.f32.xlu0 %v291
      %v293 = vpop.xlane.xlu0 %292
      %v295 = vlaneseq
      %v296 = vshrl.u32 %v295, 7
      %v297 = vsub.s32 0, %v296
      %v298 = vrot.slane %v293, %v297
      %v299 = vlaneseq
      %v300 = vshrl.u32 %v299, 7
      %v301 = vsub.s32 1, %v300
      %v302 = vrot.slane %v293, %v301
      %v303 = vlaneseq
      %v304 = vshrl.u32 %v303, 7
      %v305 = vsub.s32 2, %v304
      %v306 = vrot.slane %v293, %v305
      %v307 = vlaneseq
      %v308 = vshrl.u32 %v307, 7
      %v309 = vsub.s32 3, %v308
      %v310 = vrot.slane %v293, %v309
      %v311 = vcombine.low %v298, %v302
      %v312 = vcombine.low %v306, %v310
      %v314 = vunpack.c.l.s4 1966171168
      %v315 = vunpack.c.0.s8 %v314
      %v316 = vlaneseq
      %v317 = vshrl.u32 %v316, 7
      %v318 = vsub.s32 %v315, %v317
      %v319 = vrot.slane %v311, %v318
      %v321 = vunpack.c.l.s4 1966171168
      %v322 = vunpack.c.0.s8 %v321
      %v323 = vlaneseq
      %v324 = vshrl.u32 %v323, 7
      %v325 = vsub.s32 %v322, %v324
      %v326 = vrot.slane %v312, %v325
      %v327 = vcombine.low %v319, %v326
      %v329 = vunpack.c.l.s4 1966171168
      %v330 = vunpack.c.0.s8 %v329
      %v331 = vlaneseq
      %v332 = vshrl.u32 %v331, 7
      %v333 = vsub.s32 %v330, %v332
      %v334 = vrot.slane %v327, %v333
      %335 = vset.pattern.permute.xlu0 0
      %336 = vperm.xlu0 %335, %v334
      %v337 = vpop.permute.xlu0 %336
      %v338 = vlaneseq
      %v339 = vshrl.u32 %v338, 7
      %v340 = vsub.s32 %v261, %v339
      %v341 = vrot.slane %v337, %v340
      %v343 = vunpack.c.l.s4 1966171168
      %v344 = vunpack.c.0.s8 %v343
      %v345 = vlaneseq
      %v346 = vshrl.u32 %v345, 7
      %v347 = vsub.s32 %v344, %v346
      %v348 = vrot.slane %v341, %v347
      %v350 = vunpack.c.l.s4 1966171168
      %v351 = vunpack.c.0.s8 %v350
      %v352 = vlaneseq
      %v353 = vshrl.u32 %v352, 7
      %v354 = vsub.s32 %v351, %v353
      %v355 = vrot.slane %v348, %v354
      %v357 = vadd.f32 %v284, %v355
      %358 = vst.msk [vmem:[%s3] sm:$0x1] %vm282, %v357
      // Predicated region
      $region33: #{inplace_abn_forward.2} parent=27 // pred_check
        %p359 = pneg %p89
      $region34: #{inplace_abn_forward.2} parent=27 // pred_check_branch
        %361 = sbr.rel (%p359) target = $region36
      $region35: #{inplace_abn_forward.2} parent=27 // pred_region
        _
      $region36: #{inplace_abn_forward.2} parent=27 // pred_fallthru
        _
      // Predicated region
      $region37: #{inplace_abn_forward.2} parent=27 // pred_check
        %p362 = pneg %p110
      $region38: #{inplace_abn_forward.2} parent=27 // pred_check_branch
        %364 = sbr.rel (%p362) target = $region40
      $region39: #{inplace_abn_forward.2} parent=27 // pred_region
        _
      $region40: #{inplace_abn_forward.2} parent=27 // pred_fallthru
        _
      // Predicated region
      $region41: #{inplace_abn_forward.2} parent=27 // pred_check
        %p365 = pneg %p89
      $region42: #{inplace_abn_forward.2} parent=27 // pred_check_branch
        %367 = sbr.rel (%p365) target = $region44
      $region43: #{inplace_abn_forward.2} parent=27 // pred_region
        _
      $region44: #{inplace_abn_forward.2} parent=27 // pred_fallthru
        _
      // Predicated region
      $region45: #{inplace_abn_forward.2} parent=27 // pred_check
        %p368 = pneg %p110
      $region46: #{inplace_abn_forward.2} parent=27 // pred_check_branch
        %370 = sbr.rel (%p368) target = $region48
      $region47: #{inplace_abn_forward.2} parent=27 // pred_region
        _
      $region48: #{inplace_abn_forward.2} parent=27 // pred_fallthru
        _
    $region28: #{inplace_abn_forward.2} parent=5 // pred_fallthru
      _
    %p371 = scmp.le.s32.totalorder 2, %s10
    // Predicated region
    $region49: #{inplace_abn_forward.2} parent=5 // pred_check
      %p372 = pneg %p371
    $region50: #{inplace_abn_forward.2} parent=5 // pred_check_branch
      %374 = sbr.rel (%p372) target = $region52
    $region51: #{inplace_abn_forward.2} parent=5 // pred_region
      %s375 = ssub.s32 %s10, 2
    $region52: #{inplace_abn_forward.2} parent=5 // pred_fallthru
      _
  $region6: #{inplace_abn_forward.2} parent=0 // loop_footer
    %s14 = sadd.s32 1, %s10
  $region7: #{inplace_abn_forward.2} parent=0 // loop_footer_branch
    %9 = sbr.rel target = $region3
  $region8: #{inplace_abn_forward.2} parent=0 // loop_exit
    _

</llo_original>
